<compile_context>
chip_gen: v5e
topology: v5e:2x2
jax: 0.10.0
libtpu: 0.0.40
codegen_flags: <defaults>
</compile_context>

<pallas_src>
import functools

import jax
import jax.numpy as jnp
import numpy as np
from jax.experimental import pallas as pl
from jax.experimental.pallas import tpu as pltpu


# --------------------------- kernels ---------------------------

def _se_fused_kernel(x_ref, w1t_ref, w2t_ref, o_ref, *, inv_l):
    """Fused squeeze -> excite -> scale for a (bn, C, L) tile (full L resident)."""
    x = x_ref[...]                                                  # caller dtype
    # squeeze: mean over L (lane reduction), f32 accumulation
    y = jnp.sum(x.astype(jnp.float32), axis=-1) * inv_l             # (bn, C) f32
    # excite: two tiny matmuls (MXU) + ReLU + sigmoid (EUP)
    h = jnp.maximum(jnp.dot(y, w1t_ref[...],
                            preferred_element_type=jnp.float32), 0.0)
    s = jax.nn.sigmoid(jnp.dot(h, w2t_ref[...],
                               preferred_element_type=jnp.float32))  # (bn, C) f32
    # scale: cast gate to x.dtype, broadcast across L lanes
    o_ref[...] = x * s.astype(x.dtype)[:, :, None]


def _se_reduce_excite_kernel(x_ref, w1t_ref, w2t_ref, s_ref, acc_ref, *, inv_l):
    """Two-pass, pass 1: accumulate sum over L tiles, then excite -> s (bn, C, 1)."""
    j = pl.program_id(1)

    @pl.when(j == 0)
    def _():
        acc_ref[...] = jnp.zeros_like(acc_ref)

    acc_ref[...] += jnp.sum(x_ref[...].astype(jnp.float32), axis=-1)  # (bn, C)

    @pl.when(j == pl.num_programs(1) - 1)
    def _():
        y = acc_ref[...] * inv_l                                      # static 1/L
        h = jnp.maximum(jnp.dot(y, w1t_ref[...],
                                preferred_element_type=jnp.float32), 0.0)
        s = jax.nn.sigmoid(jnp.dot(h, w2t_ref[...],
                                   preferred_element_type=jnp.float32))
        s_ref[...] = s[:, :, None]                                    # (bn, C, 1) f32


def _se_scale_kernel(s_ref, x_ref, o_ref):
    """Two-pass, pass 2: out = x * s, L-tiled."""
    x = x_ref[...]                                                    # (bn, C, tl)
    o_ref[...] = x * s_ref[...].astype(x.dtype)                       # (bn, C, 1) bcast


# --------------------------- wrapper helpers ---------------------------

_TARGET_TILE = 4 << 20   # aim ~4 MiB per input tile
_MAX_TILE = 8 << 20      # cap so 2x in + 2x out + weights stays well under 48 MiB


def _sublane(itemsize):
    return 32 // itemsize            # 8 for f32, 16 for bf16, 32 for int8


def _padded_bytes(rows, lanes, itemsize):
    sub = _sublane(itemsize)
    r = -(-rows // sub) * sub
    l = -(-lanes // 128) * 128
    return r * l * itemsize


def _pick_divisor(n, upper):
    """Largest divisor of n that is <= upper (>= 1)."""
    b = 1
    for d in range(1, n + 1):
        if d > upper:
            break
        if n % d == 0:
            b = d
    return b


def _choose_l_tile(L, C, itemsize):
    """Largest multiple-of-128 divisor of L whose padded (C, tl) tile <= _MAX_TILE,
    preferring ones <= _TARGET_TILE. Returns None if no legal tiling exists."""
    divs = set()
    d = 1
    while d * d <= L:
        if L % d == 0:
            divs.add(d)
            divs.add(L // d)
        d += 1
    cands = [tl for tl in sorted(divs)
             if tl % 128 == 0 and _padded_bytes(C, tl, itemsize) <= _MAX_TILE]
    if cands:
        under = [tl for tl in cands if _padded_bytes(C, tl, itemsize) <= _TARGET_TILE]
        return max(under) if under else min(cands)
    if _padded_bytes(C, L, itemsize) <= _MAX_TILE:
        return L                      # full L is always a legal block shape
    return None


def _vmem_limit(tile_bytes):
    need = 4 * tile_bytes + (8 << 20)            # 2x in + 2x out + weights + slack
    return int(min(max(need, 32 << 20), 48 << 20))


# --------------------------- wrapper ---------------------------

def se_pallas(x, fc1_w, fc2_w, *, force_two_pass=False):
    """x: (N, C, L) in any float dtype (PyTorch NCL layout).
    fc1_w: (C//r, C), fc2_w: (C, C//r).  Returns (N, C, L) in x.dtype."""
    N, C, L = x.shape
    H = fc1_w.shape[0]
    assert fc2_w.shape == (C, H)

    out_dtype = x.dtype
    itemsize = jnp.dtype(out_dtype).itemsize
    inv_l = 1.0 / L                                     # static, from the wrapper

    # tiny FC weights: transpose once, keep f32, shared (resident) across grid
    w1t = jnp.transpose(fc1_w).astype(jnp.float32)      # (C, H)
    w2t = jnp.transpose(fc2_w).astype(jnp.float32)      # (H, C)

    per_sample = _padded_bytes(C, L, itemsize)          # padded VMEM bytes / sample

    # ----------------- fused single-pass path (full L resident) -----------------
    if per_sample <= _MAX_TILE and not force_two_pass:
        bn = max(1, min(N, _TARGET_TILE // per_sample))
        if N >= 2:
            bn = max(1, min(bn, N // 2))                # keep grid >= 2 (v7x 2 TCs)
        bn = _pick_divisor(N, bn)
        tile_bytes = bn * per_sample

        return pl.pallas_call(
            functools.partial(_se_fused_kernel, inv_l=inv_l),
            out_shape=jax.ShapeDtypeStruct((N, C, L), out_dtype),
            grid_spec=pltpu.PrefetchScalarGridSpec(
                num_scalar_prefetch=0,
                grid=(N // bn,),
                in_specs=[
                    pl.BlockSpec((bn, C, L), lambda i: (i, 0, 0)),
                    pl.BlockSpec((C, H), lambda i: (0, 0)),
                    pl.BlockSpec((H, C), lambda i: (0, 0)),
                ],
                out_specs=pl.BlockSpec((bn, C, L), lambda i: (i, 0, 0)),
            ),
            compiler_params=pltpu.CompilerParams(
                dimension_semantics=("parallel",),
                vmem_limit_bytes=_vmem_limit(tile_bytes),
            ),
            cost_estimate=pl.CostEstimate(
                flops=2 * N * C * L + 4 * N * C * H,
                transcendentals=N * C,
                bytes_accessed=2 * N * C * L * itemsize,
            ),
        )(x, w1t, w2t)

    # ----------------- two-pass large-L path -----------------
    tl = _choose_l_tile(L, C, itemsize)
    if tl is None:
        # TODO(synk): pathological L (no multiple-of-128 divisor and too large to
        # hold resident); fall back to the fused path with a raised VMEM limit.
        tl = L

    tile_per_sample = _padded_bytes(C, tl, itemsize)
    bn = max(1, min(N, _TARGET_TILE // tile_per_sample))
    bn = _pick_divisor(N, bn)
    tile_bytes = bn * tile_per_sample
    grid = (N // bn, L // tl)

    # Pass 1: reduce over L + excitation -> gate s of shape (N, C, 1), f32.
    s = pl.pallas_call(
        functools.partial(_se_reduce_excite_kernel, inv_l=inv_l),
        out_shape=jax.ShapeDtypeStruct((N, C, 1), jnp.float32),
        grid_spec=pltpu.PrefetchScalarGridSpec(
            num_scalar_prefetch=0,
            grid=grid,
            in_specs=[
                pl.BlockSpec((bn, C, tl), lambda i, j: (i, 0, j)),
                pl.BlockSpec((C, H), lambda i, j: (0, 0)),
                pl.BlockSpec((H, C), lambda i, j: (0, 0)),
            ],
            out_specs=pl.BlockSpec((bn, C, 1), lambda i, j: (i, 0, 0)),
            scratch_shapes=[pltpu.VMEM((bn, C), jnp.float32)],
        ),
        compiler_params=pltpu.CompilerParams(
            dimension_semantics=("parallel", "arbitrary"),
            vmem_limit_bytes=_vmem_limit(tile_bytes),
        ),
        cost_estimate=pl.CostEstimate(
            flops=N * C * L + 4 * N * C * H,
            transcendentals=N * C,
            bytes_accessed=N * C * L * itemsize,
        ),
    )(x, w1t, w2t)

    # Pass 2: L-tiled scale, both grid axes independent.
    return pl.pallas_call(
        _se_scale_kernel,
        out_shape=jax.ShapeDtypeStruct((N, C, L), out_dtype),
        grid_spec=pltpu.PrefetchScalarGridSpec(
            num_scalar_prefetch=0,
            grid=grid,
            in_specs=[
                pl.BlockSpec((bn, C, 1), lambda i, j: (i, 0, 0)),
                pl.BlockSpec((bn, C, tl), lambda i, j: (i, 0, j)),
            ],
            out_specs=pl.BlockSpec((bn, C, tl), lambda i, j: (i, 0, j)),
        ),
        compiler_params=pltpu.CompilerParams(
            dimension_semantics=("parallel", "parallel"),
            vmem_limit_bytes=_vmem_limit(tile_bytes),
        ),
        cost_estimate=pl.CostEstimate(
            flops=N * C * L,
            transcendentals=0,
            bytes_accessed=2 * N * C * L * itemsize,
        ),
    )(s, x)


# --------------------------- pure-JAX reference ---------------------------

def se_ref(x, fc1_w, fc2_w):
    xf = x.astype(jnp.float32)
    y = jnp.mean(xf, axis=-1)                               # (N, C)
    h = jnp.maximum(y @ fc1_w.T, 0.0)                       # (N, C//r)
    s = jax.nn.sigmoid(h @ fc2_w.T)                         # (N, C)
    return xf * s[:, :, None]


if __name__ == "__main__":
    # Small shapes consistent with the module (reduction=16 default => C >= 16).
    N, C, L, reduction = 2, 64, 16, 16
    H = C // reduction                                      # 4

    key = jax.random.PRNGKey(0)
    kx, k1, k2 = jax.random.split(key, 3)
    x = jax.random.normal(kx, (N, C, L), jnp.float32)
    fc1_w = 0.3 * jax.random.normal(k1, (H, C), jnp.float32)   # Linear(C -> C//r)
    fc2_w = 0.3 * jax.random.normal(k2, (C, H), jnp.float32)   # Linear(C//r -> C)

    ref = se_ref(x, fc1_w, fc2_w)

    # 1) fused single-pass path, f32 I/O
    out = jax.block_until_ready(se_pallas(x, fc1_w, fc2_w))
    np.testing.assert_allclose(np.asarray(out), np.asarray(ref), rtol=2e-3, atol=2e-3)

    # 2) two-pass (large-L fallback) path, forced at small shape for coverage
    out2 = jax.block_until_ready(se_pallas(x, fc1_w, fc2_w, force_two_pass=True))
    np.testing.assert_allclose(np.asarray(out2), np.asarray(ref), rtol=2e-3, atol=2e-3)

    # 3) bf16 I/O path (dtype preserved end-to-end; f32 accumulation inside)
    x_bf16 = x.astype(jnp.bfloat16)
    out3 = jax.block_until_ready(se_pallas(x_bf16, fc1_w, fc2_w))
    assert out3.dtype == jnp.bfloat16
    np.testing.assert_allclose(np.asarray(out3, dtype=np.float32), np.asarray(ref),
                               rtol=5e-2, atol=5e-2)

    print("KERNEL_OK")
</pallas_src>

<mosaic_0001>
module attributes {stable_mosaic.version = 11 : i64} {
  func.func @_se_fused_kernel(%arg0: i32, %arg1: memref<1x64x16xf32, #tpu.memory_space<vmem>>, %arg2: memref<64x4xf32, #tpu.memory_space<vmem>>, %arg3: memref<4x64xf32, #tpu.memory_space<vmem>>, %arg4: memref<1x64x16xf32, #tpu.memory_space<vmem>>) attributes {dimension_semantics = [#tpu.dimension_semantics<parallel>], iteration_bounds = array<i64: 2>, scalar_prefetch = 0 : i64, scratch_operands = 0 : i64, tpu.core_type = #tpu.core_type<tc>, window_params = [{transform_indices = @transform_0, window_bounds = array<i64: 1, 64, 16>}, {pipeline_mode = #tpu.pipeline_mode<synchronous>, transform_indices = @transform_1, window_bounds = array<i64: 64, 4>}, {pipeline_mode = #tpu.pipeline_mode<synchronous>, transform_indices = @transform_2, window_bounds = array<i64: 4, 64>}, {transform_indices = @transform_3, window_bounds = array<i64: 1, 64, 16>}]} {
    %c0 = arith.constant 0 : index
    %c0_0 = arith.constant 0 : index
    %c0_1 = arith.constant 0 : index
    %0 = vector.load %arg1[%c0, %c0_0, %c0_1] : memref<1x64x16xf32, #tpu.memory_space<vmem>>, vector<1x64x16xf32>
    %cst = arith.constant dense<0.000000e+00> : vector<1x64xf32>
    %1 = vector.multi_reduction <add>, %0, %cst [2] : vector<1x64x16xf32> to vector<1x64xf32>
    %cst_2 = arith.constant 6.250000e-02 : f32
    %2 = vector.broadcast %cst_2 : f32 to vector<1x64xf32>
    %3 = arith.mulf %1, %2 : vector<1x64xf32>
    %c0_3 = arith.constant 0 : index
    %c0_4 = arith.constant 0 : index
    %4 = vector.load %arg2[%c0_3, %c0_4] : memref<64x4xf32, #tpu.memory_space<vmem>>, vector<64x4xf32>
    %cst_5 = arith.constant dense<0.000000e+00> : vector<1x4xf32>
    %5 = tpu.matmul %3, %4, %cst_5 {dimension_numbers = #tpu.dot_dimension_numbers<[1], [0], [0], [1], [0, 0, 1, 1], [], []>} : vector<1x64xf32>, vector<64x4xf32>, vector<1x4xf32> -> vector<1x4xf32>
    %cst_6 = arith.constant 0.000000e+00 : f32
    %6 = vector.broadcast %cst_6 : f32 to vector<1x4xf32>
    %7 = arith.maximumf %5, %6 : vector<1x4xf32>
    %c0_7 = arith.constant 0 : index
    %c0_8 = arith.constant 0 : index
    %8 = vector.load %arg3[%c0_7, %c0_8] : memref<4x64xf32, #tpu.memory_space<vmem>>, vector<4x64xf32>
    %cst_9 = arith.constant dense<0.000000e+00> : vector<1x64xf32>
    %9 = tpu.matmul %7, %8, %cst_9 {dimension_numbers = #tpu.dot_dimension_numbers<[1], [0], [0], [1], [0, 0, 1, 1], [], []>} : vector<1x4xf32>, vector<4x64xf32>, vector<1x64xf32> -> vector<1x64xf32>
    %10 = arith.negf %9 : vector<1x64xf32>
    %11 = math.exp %10 : vector<1x64xf32>
    %cst_10 = arith.constant 1.000000e+00 : f32
    %12 = vector.broadcast %cst_10 : f32 to vector<1x64xf32>
    %13 = arith.addf %12, %11 : vector<1x64xf32>
    %14 = arith.divf %12, %13 : vector<1x64xf32>
    %15 = vector.shape_cast %14 : vector<1x64xf32> to vector<1x64x1xf32>
    %16 = vector.broadcast %15 : vector<1x64x1xf32> to vector<1x64x16xf32>
    %17 = arith.mulf %0, %16 : vector<1x64x16xf32>
    %c0_11 = arith.constant 0 : index
    %c0_12 = arith.constant 0 : index
    %c0_13 = arith.constant 0 : index
    %18 = vector.load %arg4[%c0_11, %c0_12, %c0_13] : memref<1x64x16xf32, #tpu.memory_space<vmem>>, vector<1x64x16xf32>
    tpu.vector_store %arg4[%c0_11, %c0_12, %c0_13], %17 {strides = array<i32>} : memref<1x64x16xf32, #tpu.memory_space<vmem>>, vector<1x64x16xf32>,
    return
  }
  func.func @transform_0(%arg0: i32) -> (i32, i32, i32) {
    %c0_i32 = arith.constant 0 : i32
    %c0_i32_0 = arith.constant 0 : i32
    %c0_i32_1 = arith.constant 0 : i32
    return %arg0, %c0_i32, %c0_i32_0 : i32, i32, i32
  }
  func.func @transform_1(%arg0: i32) -> (i32, i32) {
    %c0_i32 = arith.constant 0 : i32
    %c0_i32_0 = arith.constant 0 : i32
    %c0_i32_1 = arith.constant 0 : i32
    return %c0_i32, %c0_i32_0 : i32, i32
  }
  func.func @transform_2(%arg0: i32) -> (i32, i32) {
    %c0_i32 = arith.constant 0 : i32
    %c0_i32_0 = arith.constant 0 : i32
    %c0_i32_1 = arith.constant 0 : i32
    return %c0_i32, %c0_i32_0 : i32, i32
  }
  func.func @transform_3(%arg0: i32) -> (i32, i32, i32) {
    %c0_i32 = arith.constant 0 : i32
    %c0_i32_0 = arith.constant 0 : i32
    %c0_i32_1 = arith.constant 0 : i32
    return %arg0, %c0_i32, %c0_i32_0 : i32, i32, i32
  }
}

</mosaic_0001>

<llo_original>
// kernel: tpu_custom_call.1
$region0: #{tpu_custom_call.1}
  #allocation0 [shape = 'u32[]', space=smem, size = 0x4, offset = 0x4, fixed_abs, tag = 'smem constant byte address 0x4 - core index']
  #allocation1 [shape = 'u32[72,128]{1,0:T(1,128)}', space=vmem, size = 0x9000, scoped, tag = 'internal scratch']
  %s0 = inlined_call_operand.vmem [shape: f32[2,64,16], index: 0, kind: input, shape index: {}]
  %s1 = inlined_call_operand.vmem [shape: f32[64,4], index: 1, kind: input, shape index: {}]
  %s2 = inlined_call_operand.vmem [shape: f32[4,64], index: 2, kind: input, shape index: {}]
  %s3 = inlined_call_operand.vmem [shape: f32[2,64,16], index: 3, kind: output, shape index: {}]
  %s4 = sld [smem:[#allocation0]]
  $region45: #{tpu_custom_call.1} parent=0
    _
  %s6 = ssub.s32 1, %s4
  %s7 = scalar_select 0, %s6, %s4
  loop: start=0, step=1, limit=4
  $region2: #{tpu_custom_call.1} parent=0 // loop_pre_header
    _
  $region3: #{tpu_custom_call.1} parent=0 // loop_header
    %s9 = sphi 0, %s13
    %p10 = scmp.ge.s32.totalorder %s9, 4
    %s19 = sphi 0, %s21
    %s22 = sphi 0, %s19
    %s23 = sphi 0, %s22
    %s39 = sphi 0, %s23
    %s43 = sphi 0, %s43
    %s45 = sphi 0, %s43
    %s46 = sphi 0, %s45
    %s60 = sphi 0, %s46
    %s64 = sphi 0, %s64
    %s66 = sphi 0, %s64
    %s67 = sphi 0, %s66
    %s81 = sphi 0, %s67
    %s87 = sphi 0, %s89
    %s90 = sphi 0, %s87
    %s91 = sphi 0, %s90
    %s107 = sphi 0, %s91
  $region4: #{tpu_custom_call.1} parent=0 // loop_header_branch
    %12 = sbr.rel (%p10) target = $region8
  $region5: #{tpu_custom_call.1} parent=0 // loop_body
    %s14 = ssub.s32 %s9, 1
    %s15 = ssub.s32 %s9, 2
    %s16 = sadd.s32 %s9, 1
    %s17 = ssub.s32 %s9, %s16
    %p18 = scmp.eq.s32.totalorder %s17, 0
    %s20 = sadd.s32 %s19, 1
    %s21 = scalar_select %p18, %s19, %s20
    %p24 = pneg %p18
    %p25 = scmp.eq.s32.totalorder %s9, 1
    %p26 = por %p24, %p25
    %p27 = scmp.ne.s32.totalorder %s19, %s22
    %p28 = scmp.eq.s32.totalorder %s9, 0
    %p29 = por %p27, %p28
    %p30 = scmp.ne.s32.totalorder %s19, %s22
    %p31 = scmp.eq.s32.totalorder %s14, 1
    %p32 = por %p30, %p31
    %p33 = scmp.ne.s32.totalorder %s22, %s23
    %p34 = scmp.eq.s32.totalorder %s14, 0
    %p35 = por %p33, %p34
    %p36 = scmp.ne.s32.totalorder %s22, %s23
    %p37 = scmp.eq.s32.totalorder %s15, 1
    %p38 = por %p36, %p37
    %p40 = scmp.ne.s32.totalorder %s23, %s39
    %p41 = scmp.eq.s32.totalorder %s15, 0
    %p42 = por %p40, %p41
    %s44 = sadd.s32 %s43, 1
    %p47 = scmp.eq.s32.totalorder %s9, 1
    %p48 = scmp.ne.s32.totalorder %s43, %s45
    %p49 = scmp.eq.s32.totalorder %s9, 0
    %p50 = por %p48, %p49
    %p51 = scmp.ne.s32.totalorder %s43, %s45
    %p52 = scmp.eq.s32.totalorder %s14, 1
    %p53 = por %p51, %p52
    %p54 = scmp.ne.s32.totalorder %s45, %s46
    %p55 = scmp.eq.s32.totalorder %s14, 0
    %p56 = por %p54, %p55
    %p57 = scmp.ne.s32.totalorder %s45, %s46
    %p58 = scmp.eq.s32.totalorder %s15, 1
    %p59 = por %p57, %p58
    %p61 = scmp.ne.s32.totalorder %s46, %s60
    %p62 = scmp.eq.s32.totalorder %s15, 0
    %p63 = por %p61, %p62
    %s65 = sadd.s32 %s64, 1
    %p68 = scmp.eq.s32.totalorder %s9, 1
    %p69 = scmp.ne.s32.totalorder %s64, %s66
    %p70 = scmp.eq.s32.totalorder %s9, 0
    %p71 = por %p69, %p70
    %p72 = scmp.ne.s32.totalorder %s64, %s66
    %p73 = scmp.eq.s32.totalorder %s14, 1
    %p74 = por %p72, %p73
    %p75 = scmp.ne.s32.totalorder %s66, %s67
    %p76 = scmp.eq.s32.totalorder %s14, 0
    %p77 = por %p75, %p76
    %p78 = scmp.ne.s32.totalorder %s66, %s67
    %p79 = scmp.eq.s32.totalorder %s15, 1
    %p80 = por %p78, %p79
    %p82 = scmp.ne.s32.totalorder %s67, %s81
    %p83 = scmp.eq.s32.totalorder %s15, 0
    %p84 = por %p82, %p83
    %s85 = ssub.s32 %s9, %s16
    %p86 = scmp.eq.s32.totalorder %s85, 0
    %s88 = sadd.s32 %s87, 1
    %s89 = scalar_select %p86, %s87, %s88
    %p92 = pneg %p86
    %p93 = scmp.eq.s32.totalorder %s9, 1
    %p94 = por %p92, %p93
    %p95 = scmp.ne.s32.totalorder %s87, %s90
    %p96 = scmp.eq.s32.totalorder %s9, 0
    %p97 = por %p95, %p96
    %p98 = scmp.ne.s32.totalorder %s87, %s90
    %p99 = scmp.eq.s32.totalorder %s14, 1
    %p100 = por %p98, %p99
    %p101 = scmp.ne.s32.totalorder %s90, %s91
    %p102 = scmp.eq.s32.totalorder %s14, 0
    %p103 = por %p101, %p102
    %p104 = scmp.ne.s32.totalorder %s90, %s91
    %p105 = scmp.eq.s32.totalorder %s15, 1
    %p106 = por %p104, %p105
    %p108 = scmp.ne.s32.totalorder %s91, %s107
    %p109 = scmp.eq.s32.totalorder %s15, 0
    %p110 = por %p108, %p109
    %p111 = scmp.le.s32.totalorder 1, %s9
    %p112 = scmp.lt.s32.totalorder %s9, 3
    %p113 = pnand %p111, %p112
    %p114 = pneg %p113
    // Predicated region
    $region9: #{tpu_custom_call.1} parent=5 // pred_check
      _
    $region10: #{tpu_custom_call.1} parent=5 // pred_check_branch
      %116 = sbr.rel (%p113) target = $region12
    $region11: #{tpu_custom_call.1} parent=5 // pred_region
      %s117 = ssub.s32 %s9, 1
      // Predicated region
      $region13: #{tpu_custom_call.1} parent=11 // pred_check
        %p118 = pneg %p56
      $region14: #{tpu_custom_call.1} parent=11 // pred_check_branch
        %120 = sbr.rel (%p118) target = $region16
      $region15: #{tpu_custom_call.1} parent=11 // pred_region
        _
      $region16: #{tpu_custom_call.1} parent=11 // pred_fallthru
        _
      // Predicated region
      $region17: #{tpu_custom_call.1} parent=11 // pred_check
        %p121 = pneg %p77
      $region18: #{tpu_custom_call.1} parent=11 // pred_check_branch
        %123 = sbr.rel (%p121) target = $region20
      $region19: #{tpu_custom_call.1} parent=11 // pred_region
        _
      $region20: #{tpu_custom_call.1} parent=11 // pred_fallthru
        _
    $region12: #{tpu_custom_call.1} parent=5 // pred_fallthru
      _
    %p124 = scmp.lt.s32.totalorder %s9, 2
    // Predicated region
    $region21: #{tpu_custom_call.1} parent=5 // pred_check
      %p125 = pneg %p124
    $region22: #{tpu_custom_call.1} parent=5 // pred_check_branch
      %127 = sbr.rel (%p125) target = $region24
    $region23: #{tpu_custom_call.1} parent=5 // pred_region
      // Predicated region
      $region25: #{tpu_custom_call.1} parent=23 // pred_check
        %p128 = pneg %p29
      $region26: #{tpu_custom_call.1} parent=23 // pred_check_branch
        %130 = sbr.rel (%p128) target = $region28
      $region27: #{tpu_custom_call.1} parent=23 // pred_region
        %p131 = scmp.lt.s32.totalorder %s9, 1
        %s132 = scalar_select %p131, %s9, 1
        %s133 = smul.addr %s132, 8
        %s134 = smul.addr %s133, 8
        %s135 = scalar_lea.vmem %s0, %s134
      $region28: #{tpu_custom_call.1} parent=23 // pred_fallthru
        _
    $region24: #{tpu_custom_call.1} parent=5 // pred_fallthru
      _
    %p136 = scmp.le.s32.totalorder 1, %s9
    %p137 = scmp.lt.s32.totalorder %s9, 3
    %p138 = pnand %p136, %p137
    %p139 = pneg %p138
    // Predicated region
    $region29: #{tpu_custom_call.1} parent=5 // pred_check
      _
    $region30: #{tpu_custom_call.1} parent=5 // pred_check_branch
      %141 = sbr.rel (%p138) target = $region32
    $region31: #{tpu_custom_call.1} parent=5 // pred_region
      %s142 = ssub.s32 %s9, 1
      %p143 = scmp.lt.s32.totalorder %s14, 1
      %s144 = scalar_select %p143, %s14, 1
      %s145 = smul.addr %s144, 8
      %s146 = smul.addr %s145, 8
      %s147 = scalar_lea.vmem %s0, %s146
      %p148 = pneg %p35
      %p149 = pneg %p32
      %p150 = pneg %p56
      %p151 = pneg %p53
      %p152 = pneg %p77
      %p153 = pneg %p74
      %p154 = pneg %p103
      %p155 = pneg %p100
      %p156 = scmp.lt.s32.totalorder %s14, 1
      %s157 = scalar_select %p156, %s14, 1
      %s158 = smul.addr %s157, 8
      %s159 = smul.addr %s158, 8
      %s160 = scalar_lea.vmem %s3, %s159
      %p161 = scmp.lt.s32.totalorder %s14, 1
      %s162 = scalar_select %p161, %s14, 1
      %s163 = smul.addr %s162, 8
      %s164 = smul.addr %s163, 8
      %s165 = scalar_lea.vmem %s0, %s164
      %p166 = scmp.lt.s32.totalorder %s14, 1
      %s167 = scalar_select %p166, %s14, 1
      %s168 = smul.addr %s167, 8
      %s169 = smul.addr %s168, 8
      %s170 = scalar_lea.vmem %s3, %s169
      %v171 = vld [vmem:[%s165] sm:$0xff]
      %v172 = vld [vmem:[%s165 + $0x8] sm:$0xff]
      %v173 = vld [vmem:[%s165 + $0x10] sm:$0xff]
      %v174 = vld [vmem:[%s165 + $0x18] sm:$0xff]
      %v175 = vld [vmem:[%s165 + $0x20] sm:$0xff]
      %v176 = vld [vmem:[%s165 + $0x28] sm:$0xff]
      %v177 = vld [vmem:[%s165 + $0x30] sm:$0xff]
      %v178 = vld [vmem:[%s165 + $0x38] sm:$0xff]
      %vm179 = vcmask 130048
      %v180 = vsel %vm179, %v171, 0.0
      %181 = vadd.xlane.f32.xlu0 %v180
      %v182 = vpop.xlane.xlu0 %181
      %v183 = vsel %vm179, %v172, 0.0
      %184 = vadd.xlane.f32.xlu0 %v183
      %v185 = vpop.xlane.xlu0 %184
      %v186 = vsel %vm179, %v173, 0.0
      %187 = vadd.xlane.f32.xlu0 %v186
      %v188 = vpop.xlane.xlu0 %187
      %v189 = vsel %vm179, %v174, 0.0
      %190 = vadd.xlane.f32.xlu0 %v189
      %v191 = vpop.xlane.xlu0 %190
      %v192 = vsel %vm179, %v175, 0.0
      %193 = vadd.xlane.f32.xlu0 %v192
      %v194 = vpop.xlane.xlu0 %193
      %v195 = vsel %vm179, %v176, 0.0
      %196 = vadd.xlane.f32.xlu0 %v195
      %v197 = vpop.xlane.xlu0 %196
      %v198 = vsel %vm179, %v177, 0.0
      %199 = vadd.xlane.f32.xlu0 %v198
      %v200 = vpop.xlane.xlu0 %199
      %v201 = vsel %vm179, %v178, 0.0
      %202 = vadd.xlane.f32.xlu0 %v201
      %v203 = vpop.xlane.xlu0 %202
      %v204 = vmul.f32 %v182, 0.0625
      %v205 = vmul.f32 %v185, 0.0625
      %v206 = vmul.f32 %v188, 0.0625
      %v207 = vmul.f32 %v191, 0.0625
      %v208 = vmul.f32 %v194, 0.0625
      %v209 = vmul.f32 %v197, 0.0625
      %v210 = vmul.f32 %v200, 0.0625
      %v211 = vmul.f32 %v203, 0.0625
      %v212 = vld [vmem:[%s1] sm:$0xff]
      %v213 = vld [vmem:[%s1 + $0x8] sm:$0xff]
      %v214 = vld [vmem:[%s1 + $0x10] sm:$0xff]
      %v215 = vld [vmem:[%s1 + $0x18] sm:$0xff]
      %v216 = vld [vmem:[%s1 + $0x20] sm:$0xff]
      %v217 = vld [vmem:[%s1 + $0x28] sm:$0xff]
      %v218 = vld [vmem:[%s1 + $0x30] sm:$0xff]
      %v219 = vld [vmem:[%s1 + $0x38] sm:$0xff]
      %v228 = vlaneseq
      %v229 = vand.u32 %v228, 127
      %v230 = vperm.slane %v204, %v229
      %v231 = vadd.s32 %v229, 4294967288
      %v232 = vperm.slane %v205, %v231
      %vm233 = vcmask 130112
      %v234 = vsel %vm233, %v232, %v230
      %v235 = vadd.s32 %v229, 4294967280
      %v236 = vperm.slane %v206, %v235
      %vm237 = vcmask 195712
      %v238 = vsel %vm237, %v236, %v234
      %v239 = vadd.s32 %v229, 4294967272
      %v240 = vperm.slane %v207, %v239
      %vm241 = vcmask 261312
      %v242 = vsel %vm241, %v240, %v238
      %v243 = vadd.s32 %v229, 4294967264
      %v244 = vperm.slane %v208, %v243
      %vm245 = vcmask 326912
      %v246 = vsel %vm245, %v244, %v242
      %v247 = vadd.s32 %v229, 4294967256
      %v248 = vperm.slane %v209, %v247
      %vm249 = vcmask 392512
      %v250 = vsel %vm249, %v248, %v246
      %v251 = vadd.s32 %v229, 4294967248
      %v252 = vperm.slane %v210, %v251
      %vm253 = vcmask 458112
      %v254 = vsel %vm253, %v252, %v250
      %v255 = vadd.s32 %v229, 4294967240
      %v256 = vperm.slane %v211, %v255
      %vm257 = vcmask 523712
      %v258 = vsel %vm257, %v256, %v254
      %vm259 = vcmask 523264
      %v260 = vsel %vm259, %v258, 0
      %262 = vmatpush.msra.mxu0 0.0
      %263 = vmatpush.msra.mxu0 0.0
      %264 = vmatpush.msra.mxu0 0.0
      %265 = vmatpush.msra.mxu0 0.0
      %266 = vmatpush.msra.mxu0 0.0
      %267 = vmatpush.msra.mxu0 0.0
      %268 = vmatpush.msra.mxu0 0.0
      %269 = vmatpush.msra.mxu0 0.0
      %270 = vmatpush.msra.mxu0 %v219
      %271 = vmatpush.msra.mxu0 %v218
      %272 = vmatpush.msra.mxu0 %v217
      %273 = vmatpush.msra.mxu0 %v216
      %274 = vmatpush.msra.mxu0 %v215
      %275 = vmatpush.msra.mxu0 %v214
      %276 = vmatpush.msra.mxu0 %v213
      %277 = vmatpush.msra.mxu0 %v212
      %278 = vmatmul.f32.gmra.mxu0 %v260
      %v279 = vpop.f32.mrf.mxu0
      %v280 = vadd.f32 0.0, %v279
      %281 = vdwg.mxu0
      %v282 = vmax.f32 %v280, 0.0
      %v283 = vld [vmem:[%s2] sm:$0xf]
      %vm284 = vcmask 31744
      %v286 = vsel %vm284, %v282, 0
      %vm288 = vcmask 1043456
      %v290 = vsel %vm288, %v283, 0
      %292 = vmatpush.msra.mxu0 0.0
      %293 = vmatpush.msra.mxu0 0.0
      %294 = vmatpush.msra.mxu0 0.0
      %295 = vmatpush.msra.mxu0 0.0
      %296 = vmatpush.msra.mxu0 0.0
      %297 = vmatpush.msra.mxu0 0.0
      %298 = vmatpush.msra.mxu0 0.0
      %299 = vmatpush.msra.mxu0 0.0
      %300 = vmatpush.msra.mxu0 0.0
      %301 = vmatpush.msra.mxu0 0.0
      %302 = vmatpush.msra.mxu0 0.0
      %303 = vmatpush.msra.mxu0 0.0
      %304 = vmatpush.msra.mxu0 0.0
      %305 = vmatpush.msra.mxu0 0.0
      %306 = vmatpush.msra.mxu0 0.0
      %307 = vmatpush.msra.mxu0 %v290
      %308 = vmatmul.f32.gmra.mxu0 %v286
      %v309 = vpop.f32.mrf.mxu0
      %v310 = vadd.f32 0.0, %v309
      %311 = vdwg.mxu0
      %v312 = vxor.u32 %v310, 2147483648
      %v313 = vmul.f32 %v312, 1.442695
      %v314 = vpow.pop %v313
      %v315 = vadd.f32 %v314, 1.0
      %v316 = vrcp.pop %v315
      %v317 = vmul.f32 %v315, %v316
      %v318 = vsub.f32 1.0, %v317
      %v319 = vmul.f32 %v316, %v318
      %v320 = vadd.f32 %v316, %v319
      %vm321 = vweird.f32 %v315
      %vm322 = vweird.f32 %v316
      %vm323 = vmor %vm321, %vm322
      %v324 = vsel %vm323, %v316, %v320
      %v325 = vand.u32 2147483647, %v315
      %vm326 = vcmp.eq.f32.partialorder %v325, 8.507059e+37
      %v327 = vand.u32 %v315, 2147483648
      %v328 = vor.u32 1.1754944e-38, %v327
      %v329 = vsel %vm326, %v328, %v324
      %v330 = vmul.f32 1.0, %v329
      %v331 = vperm.slane %v330, 0
      %v332 = vlaneseq
      %v333 = vshrl.u32 %v332, 7
      %335 = vset.pattern.permute.xlu0 %v333
      %336 = vperm.xlu0 %335, %v331
      %v337 = vpop.permute.xlu0 %336
      %v338 = vlaneseq
      %v339 = vshrl.u32 %v338, 7
      %v340 = vadd.s32 %v339, 8
      %341 = vset.pattern.permute.xlu0 %v340
      %342 = vperm.xlu0 %341, %v331
      %v343 = vpop.permute.xlu0 %342
      %v344 = vlaneseq
      %v345 = vshrl.u32 %v344, 7
      %v346 = vadd.s32 %v345, 16
      %347 = vset.pattern.permute.xlu0 %v346
      %348 = vperm.xlu0 %347, %v331
      %v349 = vpop.permute.xlu0 %348
      %v350 = vlaneseq
      %v351 = vshrl.u32 %v350, 7
      %v352 = vadd.s32 %v351, 24
      %353 = vset.pattern.permute.xlu0 %v352
      %354 = vperm.xlu0 %353, %v331
      %v355 = vpop.permute.xlu0 %354
      %v356 = vlaneseq
      %v357 = vshrl.u32 %v356, 7
      %v358 = vadd.s32 %v357, 32
      %359 = vset.pattern.permute.xlu0 %v358
      %360 = vperm.xlu0 %359, %v331
      %v361 = vpop.permute.xlu0 %360
      %v362 = vlaneseq
      %v363 = vshrl.u32 %v362, 7
      %v364 = vadd.s32 %v363, 40
      %365 = vset.pattern.permute.xlu0 %v364
      %366 = vperm.xlu0 %365, %v331
      %v367 = vpop.permute.xlu0 %366
      %v368 = vlaneseq
      %v369 = vshrl.u32 %v368, 7
      %v370 = vadd.s32 %v369, 48
      %371 = vset.pattern.permute.xlu0 %v370
      %372 = vperm.xlu0 %371, %v331
      %v373 = vpop.permute.xlu0 %372
      %v374 = vlaneseq
      %v375 = vshrl.u32 %v374, 7
      %v376 = vadd.s32 %v375, 56
      %377 = vset.pattern.permute.xlu0 %v376
      %378 = vperm.xlu0 %377, %v331
      %v379 = vpop.permute.xlu0 %378
      %v380 = vmul.f32 %v171, %v337
      %v381 = vmul.f32 %v172, %v343
      %v382 = vmul.f32 %v173, %v349
      %v383 = vmul.f32 %v174, %v355
      %v384 = vmul.f32 %v175, %v361
      %v385 = vmul.f32 %v176, %v367
      %v386 = vmul.f32 %v177, %v373
      %v387 = vmul.f32 %v178, %v379
      %388 = vst.msk [vmem:[%s170] sm:$0xff] %vm179, %v380
      %389 = vst.msk [vmem:[%s170 + $0x8] sm:$0xff] %vm179, %v381
      %390 = vst.msk [vmem:[%s170 + $0x10] sm:$0xff] %vm179, %v382
      %391 = vst.msk [vmem:[%s170 + $0x18] sm:$0xff] %vm179, %v383
      %392 = vst.msk [vmem:[%s170 + $0x20] sm:$0xff] %vm179, %v384
      %393 = vst.msk [vmem:[%s170 + $0x28] sm:$0xff] %vm179, %v385
      %394 = vst.msk [vmem:[%s170 + $0x30] sm:$0xff] %vm179, %v386
      %395 = vst.msk [vmem:[%s170 + $0x38] sm:$0xff] %vm179, %v387
      %p396 = scmp.lt.s32.totalorder %s14, 1
      %s397 = scalar_select %p396, %s14, 1
      %s398 = smul.addr %s397, 8
      %s399 = smul.addr %s398, 8
      %s400 = scalar_lea.vmem %s3, %s399
      // Predicated region
      $region33: #{tpu_custom_call.1} parent=31 // pred_check
        %p401 = pneg %p100
      $region34: #{tpu_custom_call.1} parent=31 // pred_check_branch
        %403 = sbr.rel (%p401) target = $region36
      $region35: #{tpu_custom_call.1} parent=31 // pred_region
        _
      $region36: #{tpu_custom_call.1} parent=31 // pred_fallthru
        _
    $region32: #{tpu_custom_call.1} parent=5 // pred_fallthru
      _
    %p404 = scmp.le.s32.totalorder 2, %s9
    // Predicated region
    $region37: #{tpu_custom_call.1} parent=5 // pred_check
      %p405 = pneg %p404
    $region38: #{tpu_custom_call.1} parent=5 // pred_check_branch
      %407 = sbr.rel (%p405) target = $region40
    $region39: #{tpu_custom_call.1} parent=5 // pred_region
      %s408 = ssub.s32 %s9, 2
      // Predicated region
      $region41: #{tpu_custom_call.1} parent=39 // pred_check
        %p409 = pneg %p106
      $region42: #{tpu_custom_call.1} parent=39 // pred_check_branch
        %411 = sbr.rel (%p409) target = $region44
      $region43: #{tpu_custom_call.1} parent=39 // pred_region
        %p412 = scmp.lt.s32.totalorder %s15, 1
        %s413 = scalar_select %p412, %s15, 1
        %s414 = smul.addr %s413, 8
        %s415 = smul.addr %s414, 8
        %s416 = scalar_lea.vmem %s3, %s415
      $region44: #{tpu_custom_call.1} parent=39 // pred_fallthru
        _
    $region40: #{tpu_custom_call.1} parent=5 // pred_fallthru
      _
  $region6: #{tpu_custom_call.1} parent=0 // loop_footer
    %s13 = sadd.s32 1, %s9
  $region7: #{tpu_custom_call.1} parent=0 // loop_footer_branch
    %8 = sbr.rel target = $region3
  $region8: #{tpu_custom_call.1} parent=0 // loop_exit
    _

</llo_original>
